<compile_context>
chip_gen: v7x
topology: tpu7x:2x2x1
jax: 0.10.0
libtpu: 0.0.40
codegen_flags: <defaults>
</compile_context>

<pallas_src>
import jax
import jax.numpy as jnp
from jax.experimental import pallas as pl
from jax.experimental.pallas import tpu as pltpu

# One full vreg: 8 sublanes x 128 lanes of f32.
_SUBLANES = 8
_LANES = 128


def _passthrough_kernel(x_ref, o_ref):
    # The reference forward() is `pass`: there is no compute to perform.
    # This kernel only realizes the identity data path (HBM -> VMEM -> HBM,
    # aliased) on a single full (8, 128) vreg tile; it is NOT called from
    # forward().  Full-tile load + unmasked full-tile store.
    o_ref[...] = x_ref[...]


@jax.jit
def connect_four_passthrough(x):
    """Minimal-overhead identity data path through a Pallas TPU kernel.

    Used only for standalone validation (exactly once), never from the model's
    forward().  The NCHW board tensor is flattened to a lane-dense 2D slab
    (N, C*H*W) and zero-padded in the wrapper to a single full (8, 128) vreg so
    the kernel's store is an unmasked vst (no masked partial-store codegen),
    then sliced/reshaped back to the original shape.
    """
    n, c, h, w = x.shape
    flat = c * h * w
    x2d = x.reshape(n, flat)

    # Pad sublane dim to 8 and lane dim to a multiple of 128 (wrapper-side;
    # the kernel only ever sees full, aligned tiles).
    pad_rows = (-n) % _SUBLANES
    pad_cols = (-flat) % _LANES
    x_pad = jnp.pad(x2d, ((0, pad_rows), (0, pad_cols)))

    y_pad = pl.pallas_call(
        _passthrough_kernel,
        out_shape=jax.ShapeDtypeStruct(x_pad.shape, x_pad.dtype),
        in_specs=[pl.BlockSpec(memory_space=pltpu.MemorySpace.VMEM)],
        out_specs=pl.BlockSpec(memory_space=pltpu.MemorySpace.VMEM),
        # Alias input -> output: no separate HBM output allocation (DMA read +
        # write still happen, which is exactly the data path being validated).
        input_output_aliases={0: 0},
    )(x_pad)

    return y_pad[:n, :flat].reshape(n, c, h, w)


class ConnectFourModel:
    """JAX/Pallas mirror of the PyTorch ConnectFourModel.

    The PyTorch __init__ registers no parameters, so there is nothing to
    initialize.  forward()/predict() mirror the reference exactly: they perform
    no computation and return None.  No kernel is launched on the hot path.
    """

    def __init__(self, game=None, device=None):
        self.game = game
        self.device = device
        # No parameters: the reference nn.Module defines none.

    def forward(self, x):
        # Reference: `def forward(self, x): pass`  -> returns None.
        # TODO(synk): reference forward() has no body; nothing to translate,
        # so no Pallas kernel is invoked here (it would be dead launch overhead).
        return None

    def predict(self, board):
        # Reference: `def predict(self, board): pass` -> returns None.
        # TODO(synk): reference predict() has no body; nothing to translate.
        return None


if __name__ == "__main__":
    key = jax.random.PRNGKey(0)
    # Small, deterministic example board batch: (N, C, H, W) = (2, 3, 6, 7)
    # (Connect-Four board is 6 rows x 7 columns; C = 3 feature planes).
    x = jax.random.normal(key, (2, 3, 6, 7), dtype=jnp.float32)

    model = ConnectFourModel(game=None, device=None)

    # forward()/predict() match the reference semantics exactly (return None,
    # launch nothing).
    assert model.forward(x) is None
    assert model.predict(x) is None

    # One-shot standalone validation of the Pallas identity data path,
    # deliberately outside any hot loop.
    y = jax.block_until_ready(connect_four_passthrough(x))
    assert y.shape == x.shape and y.dtype == x.dtype
    assert bool(jnp.allclose(y, x))

    print("KERNEL_OK")
</pallas_src>

<mosaic_0001>
module attributes {stable_mosaic.version = 11 : i64} {
  func.func @_passthrough_kernel(%arg0: memref<8x128xf32, #tpu.memory_space<vmem>>, %arg1: memref<8x128xf32, #tpu.memory_space<vmem>>) attributes {dimension_semantics = [], scalar_prefetch = 0 : i64, scratch_operands = 0 : i64, tpu.core_type = #tpu.core_type<tc>} {
    %c0 = arith.constant 0 : index
    %c0_0 = arith.constant 0 : index
    %0 = vector.load %arg0[%c0, %c0_0] : memref<8x128xf32, #tpu.memory_space<vmem>>, vector<8x128xf32>
    %c0_1 = arith.constant 0 : index
    %c0_2 = arith.constant 0 : index
    %1 = vector.load %arg1[%c0_1, %c0_2] : memref<8x128xf32, #tpu.memory_space<vmem>>, vector<8x128xf32>
    tpu.vector_store %arg1[%c0_1, %c0_2], %0 {strides = array<i32>} : memref<8x128xf32, #tpu.memory_space<vmem>>, vector<8x128xf32>,
    return
  }
}

</mosaic_0001>

<llo_original>
// kernel: connect_four_passthrough.1
$region0: #{connect_four_passthrough.1}
  #allocation0 [shape = 'u32[]', space=smem, size = 0x4, offset = 0x4, fixed_abs, tag = 'smem constant byte address 0x4 - core index']
  #allocation1 [shape = 'u32[144,128]{1,0:T(1,128)}', space=vmem, size = 0x12000, scoped, tag = 'internal scratch']
  %s0 = inlined_call_operand.vmem [shape: f32[8,128], index: 0, kind: input, shape index: {}, may-alias: {0,1}]
  %s1 = inlined_call_operand.vmem [shape: f32[8,128], index: 1, kind: output, shape index: {}, may-alias: {0,1}]
  %s2 = sld [smem:[#allocation0]]
  $region14: #{connect_four_passthrough.1} parent=0
    _
  %s4 = ssub.s32 1, %s2
  %s5 = scalar_select 0, %s4, %s2
  // Predicated region
  $region2: #{connect_four_passthrough.1} parent=0 // pred_check
    _
  $region3: #{connect_four_passthrough.1} parent=0 // pred_check_branch
    %7 = sbr.rel (0) target = $region5
  $region4: #{connect_four_passthrough.1} parent=0 // pred_region
    _
  $region5: #{connect_four_passthrough.1} parent=0 // pred_fallthru
    _
  %v8 = vld [vmem:[%s0] sm:$0xff]
  %9 = vst [vmem:[%s1] sm:$0xff] %v8
  // Predicated region
  $region6: #{connect_four_passthrough.1} parent=0 // pred_check
    _
  $region7: #{connect_four_passthrough.1} parent=0 // pred_check_branch
    %11 = sbr.rel (0) target = $region9
  $region8: #{connect_four_passthrough.1} parent=0 // pred_region
    _
  $region9: #{connect_four_passthrough.1} parent=0 // pred_fallthru
    _
  // Predicated region
  $region10: #{connect_four_passthrough.1} parent=0 // pred_check
    _
  $region11: #{connect_four_passthrough.1} parent=0 // pred_check_branch
    %13 = sbr.rel (0) target = $region13
  $region12: #{connect_four_passthrough.1} parent=0 // pred_region
    _
  $region13: #{connect_four_passthrough.1} parent=0 // pred_fallthru
    _

</llo_original>
